<compile_context>
chip_gen: v6e
topology: v6e:2x2x1
jax: 0.10.0
libtpu: 0.0.40
codegen_flags: <defaults>
</compile_context>

<pallas_src>
import jax
import jax.numpy as jnp
from jax.experimental import pallas as pl
from jax.experimental.pallas import tpu as pltpu

LN_EPS = 1e-5


def _round_up(a, b):
    return ((a + b - 1) // b) * b


def _make_hash_kernel(n_bits_logical: int, n_bits_padded: int):
    inv_n = 1.0 / float(n_bits_logical)
    padded = n_bits_padded != n_bits_logical

    def kernel(x_ref, w_ref, gamma_ref, beta_ref, o_ref):
        # x_ref: (tm, fc_dim) bf16, w_ref: (fc_dim, n_pad) bf16 (resident),
        # gamma/beta: (1, n_pad) f32, o_ref: (tm, n_pad) f32
        # bf16 MXU matmul with f32 accumulation.
        h = jnp.dot(x_ref[...], w_ref[...], preferred_element_type=jnp.float32)

        # LayerNorm over the logical N_bits (biased variance, matches torch).
        mean = jnp.sum(h, axis=-1, keepdims=True) * inv_n
        if padded:
            # Padded W columns are zero => padded h columns are exactly 0, so
            # plain sums over the padded lane axis equal sums over the logical
            # bits; use E[h^2] - mean^2 so the padding never enters the stats.
            var = jnp.sum(h * h, axis=-1, keepdims=True) * inv_n - mean * mean
            var = jnp.maximum(var, 0.0)
        else:
            c = h - mean
            var = jnp.sum(c * c, axis=-1, keepdims=True) * inv_n

        inv = jax.lax.rsqrt(var + LN_EPS)                      # EUP
        y = (h - mean) * inv * gamma_ref[...] + beta_ref[...]  # f32 VPU (v5e-safe)
        # Padded gamma/beta are zero -> padded output columns are tanh(0)=0.
        o_ref[...] = jnp.tanh(y).astype(o_ref.dtype)

    return kernel


def _pallas_hash(x_bf, w_bf, gamma2, beta2, *, tm, n_bits, single_buffer_consts):
    b_pad, fc_dim = x_bf.shape
    _, n_pad = w_bf.shape
    grid = b_pad // tm

    const_kwargs = {}
    if single_buffer_consts:
        # Weight / gamma / beta are grid-invariant: no need to double-buffer.
        const_kwargs = dict(pipeline_mode=pl.Buffered(1))

    # VMEM budget: 2x bf16 X tiles + weight copies + 2x f32 output tiles.
    n_wbuf = 1 if single_buffer_consts else 2
    vmem_bytes = (2 * tm * fc_dim * 2
                  + n_wbuf * fc_dim * n_pad * 2
                  + 2 * tm * n_pad * 4
                  + 4 * n_pad * 4)
    vmem_limit = int(vmem_bytes * 1.5) + (1 << 20)
    vmem_limit = max(vmem_limit, 32 << 20)
    vmem_limit = min(vmem_limit, 64 << 20)  # stay inside v7x's 64 MiB VMEM

    cost = pl.CostEstimate(
        flops=2 * b_pad * fc_dim * n_pad,
        transcendentals=b_pad * n_pad,
        bytes_accessed=(b_pad * fc_dim * 2 + fc_dim * n_pad * 2
                        + b_pad * n_pad * 4 + 2 * n_pad * 4),
    )

    kernel = _make_hash_kernel(n_bits, n_pad)

    return pl.pallas_call(
        kernel,
        out_shape=jax.ShapeDtypeStruct((b_pad, n_pad), jnp.float32),
        grid_spec=pltpu.PrefetchScalarGridSpec(
            num_scalar_prefetch=0,
            grid=(grid,),
            in_specs=[
                pl.BlockSpec((tm, fc_dim), lambda i: (i, 0)),
                pl.BlockSpec((fc_dim, n_pad), lambda i: (0, 0), **const_kwargs),
                pl.BlockSpec((1, n_pad), lambda i: (0, 0), **const_kwargs),
                pl.BlockSpec((1, n_pad), lambda i: (0, 0), **const_kwargs),
            ],
            out_specs=pl.BlockSpec((tm, n_pad), lambda i: (i, 0)),
        ),
        compiler_params=pltpu.CompilerParams(
            dimension_semantics=("parallel",),
            vmem_limit_bytes=vmem_limit,
        ),
        cost_estimate=cost,
    )(x_bf, w_bf, gamma2, beta2)


def hash_func_forward(x, w_t, gamma, beta, *, tm=512):
    """x: (B, fc_dim) f32; w_t: (fc_dim, N_bits); gamma/beta: (N_bits,) -> (B, N_bits) f32."""
    B, fc_dim = x.shape
    _, n_bits = w_t.shape

    # Lane-dense output: pad N_bits to a multiple of 128.
    n_pad = _round_up(n_bits, 128)

    # Batch tile: as large as allowed, but keep >=2 grid steps when the batch
    # allows so the single ("parallel") grid axis shards across v7x's 2 TCs.
    b_min = _round_up(B, 8)
    tm_eff = _round_up(min(tm, b_min), 8)
    if b_min > 8 and pl.cdiv(b_min, tm_eff) < 2:
        tm_eff = _round_up(pl.cdiv(b_min, 2), 8)
    # Shrink the tile until the (conservative, double-buffered-weight) VMEM
    # footprint fits a ~48 MiB budget (v7x headroom).
    while tm_eff > 8 and (2 * tm_eff * fc_dim * 2 + 2 * fc_dim * n_pad * 2
                          + 2 * tm_eff * n_pad * 4) > (48 << 20):
        tm_eff = max(8, _round_up(tm_eff // 2, 8))
    # TODO(synk): for very large fc_dim (>~16K) add a K grid axis with a VMEM
    # f32 accumulator (init/finalize via pl.when) instead of one full-K block.
    b_pad = _round_up(B, tm_eff)

    # bf16 MXU operands; everything else stays f32 inside the kernel.
    x_bf = jnp.pad(x.astype(jnp.bfloat16), ((0, b_pad - B), (0, 0)))
    w_bf = jnp.pad(w_t.astype(jnp.bfloat16), ((0, 0), (0, n_pad - n_bits)))
    gamma2 = jnp.pad(gamma.astype(jnp.float32), (0, n_pad - n_bits)).reshape(1, n_pad)
    beta2 = jnp.pad(beta.astype(jnp.float32), (0, n_pad - n_bits)).reshape(1, n_pad)

    try:
        out = _pallas_hash(x_bf, w_bf, gamma2, beta2, tm=tm_eff, n_bits=n_bits,
                           single_buffer_consts=True)
    except Exception:
        # Fallback for jax versions where BlockSpec(pipeline_mode=...) is not
        # honored by pallas_call; costs one extra VMEM copy of the weight.
        out = _pallas_hash(x_bf, w_bf, gamma2, beta2, tm=tm_eff, n_bits=n_bits,
                           single_buffer_consts=False)
    return out[:B, :n_bits]


def xavier_uniform(key, shape, gain):
    fan_out, fan_in = shape  # torch convention for a (out, in) matrix
    limit = gain * jnp.sqrt(6.0 / (fan_in + fan_out))
    return jax.random.uniform(key, shape, jnp.float32, -limit, limit)


if __name__ == "__main__":
    # Small shapes consistent with the module: Linear(fc_dim -> N_bits).
    # B=24 / N_bits=64 exercise both the batch padding and the lane (128)
    # padding paths while staying small.
    B, fc_dim, n_bits = 24, 128, 64
    NB_CLS = 21  # P exists in the module but is unused in forward.

    key = jax.random.PRNGKey(0)
    k_x, k_w, k_p = jax.random.split(key, 3)

    x = jax.random.normal(k_x, (B, fc_dim), jnp.float32)
    # Linear weight is (N_bits, fc_dim) in PyTorch; pre-transpose for the kernel.
    w = xavier_uniform(k_w, (n_bits, fc_dim), gain=1.0)
    w_t = w.T
    gamma = jnp.ones((n_bits,), jnp.float32)   # LayerNorm weight init
    beta = jnp.zeros((n_bits,), jnp.float32)   # LayerNorm bias init
    # P is part of the module's state but not used in forward(); built for parity.
    P = xavier_uniform(k_p, (NB_CLS, n_bits), gain=5.0 / 3.0)

    out = hash_func_forward(x, w_t, gamma, beta)
    jax.block_until_ready(out)
    assert out.shape == (B, n_bits)

    # Reference in plain JAX using the same bf16-rounded MXU operands.
    x32 = x.astype(jnp.bfloat16).astype(jnp.float32)
    w32 = w_t.astype(jnp.bfloat16).astype(jnp.float32)
    h = x32 @ w32
    mu = h.mean(-1, keepdims=True)
    var = ((h - mu) ** 2).mean(-1, keepdims=True)
    ref = jnp.tanh((h - mu) / jnp.sqrt(var + LN_EPS) * gamma + beta)
    assert jnp.allclose(out, ref, atol=2e-4, rtol=2e-4), float(jnp.max(jnp.abs(out - ref)))

    print("KERNEL_OK")
</pallas_src>

<mosaic_0001>
module attributes {stable_mosaic.version = 11 : i64} {
  func.func @kernel(%arg0: i32, %arg1: memref<16x128xbf16, #tpu.memory_space<vmem>>, %arg2: memref<128x128xbf16, #tpu.memory_space<vmem>>, %arg3: memref<1x128xf32, #tpu.memory_space<vmem>>, %arg4: memref<1x128xf32, #tpu.memory_space<vmem>>, %arg5: memref<16x128xf32, #tpu.memory_space<vmem>>) attributes {dimension_semantics = [#tpu.dimension_semantics<parallel>], iteration_bounds = array<i64: 2>, scalar_prefetch = 0 : i64, scratch_operands = 0 : i64, tpu.core_type = #tpu.core_type<tc>, window_params = [{transform_indices = @transform_0, window_bounds = array<i64: 16, 128>}, {pipeline_mode = #tpu.pipeline_mode<synchronous>, transform_indices = @transform_1, window_bounds = array<i64: 128, 128>}, {pipeline_mode = #tpu.pipeline_mode<synchronous>, transform_indices = @transform_2, window_bounds = array<i64: 1, 128>}, {pipeline_mode = #tpu.pipeline_mode<synchronous>, transform_indices = @transform_3, window_bounds = array<i64: 1, 128>}, {transform_indices = @transform_4, window_bounds = array<i64: 16, 128>}]} {
    %c0 = arith.constant 0 : index
    %c0_0 = arith.constant 0 : index
    %0 = vector.load %arg1[%c0, %c0_0] : memref<16x128xbf16, #tpu.memory_space<vmem>>, vector<16x128xbf16>
    %c0_1 = arith.constant 0 : index
    %c0_2 = arith.constant 0 : index
    %1 = vector.load %arg2[%c0_1, %c0_2] : memref<128x128xbf16, #tpu.memory_space<vmem>>, vector<128x128xbf16>
    %cst = arith.constant dense<0.000000e+00> : vector<16x128xf32>
    %2 = tpu.matmul %0, %1, %cst {dimension_numbers = #tpu.dot_dimension_numbers<[1], [0], [0], [1], [0, 0, 1, 1], [], []>} : vector<16x128xbf16>, vector<128x128xbf16>, vector<16x128xf32> -> vector<16x128xf32>
    %cst_3 = arith.constant dense<0.000000e+00> : vector<16xf32>
    %3 = vector.multi_reduction <add>, %2, %cst_3 [1] : vector<16x128xf32> to vector<16xf32>
    %4 = vector.shape_cast %3 : vector<16xf32> to vector<16x1xf32>
    %cst_4 = arith.constant 1.562500e-02 : f32
    %5 = vector.broadcast %cst_4 : f32 to vector<16x1xf32>
    %6 = arith.mulf %4, %5 : vector<16x1xf32>
    %7 = arith.mulf %2, %2 : vector<16x128xf32>
    %cst_5 = arith.constant dense<0.000000e+00> : vector<16xf32>
    %8 = vector.multi_reduction <add>, %7, %cst_5 [1] : vector<16x128xf32> to vector<16xf32>
    %9 = vector.shape_cast %8 : vector<16xf32> to vector<16x1xf32>
    %cst_6 = arith.constant 1.562500e-02 : f32
    %10 = vector.broadcast %cst_6 : f32 to vector<16x1xf32>
    %11 = arith.mulf %9, %10 : vector<16x1xf32>
    %12 = arith.mulf %6, %6 : vector<16x1xf32>
    %13 = arith.subf %11, %12 : vector<16x1xf32>
    %cst_7 = arith.constant 0.000000e+00 : f32
    %14 = vector.broadcast %cst_7 : f32 to vector<16x1xf32>
    %15 = arith.maximumf %13, %14 : vector<16x1xf32>
    %cst_8 = arith.constant 9.99999974E-6 : f32
    %16 = vector.broadcast %cst_8 : f32 to vector<16x1xf32>
    %17 = arith.addf %15, %16 : vector<16x1xf32>
    %18 = math.rsqrt %17 : vector<16x1xf32>
    %19 = vector.broadcast %6 : vector<16x1xf32> to vector<16x128xf32>
    %20 = arith.subf %2, %19 : vector<16x128xf32>
    %21 = vector.broadcast %18 : vector<16x1xf32> to vector<16x128xf32>
    %22 = arith.mulf %20, %21 : vector<16x128xf32>
    %c0_9 = arith.constant 0 : index
    %c0_10 = arith.constant 0 : index
    %23 = vector.load %arg3[%c0_9, %c0_10] : memref<1x128xf32, #tpu.memory_space<vmem>>, vector<1x128xf32>
    %24 = vector.broadcast %23 : vector<1x128xf32> to vector<16x128xf32>
    %25 = arith.mulf %22, %24 : vector<16x128xf32>
    %c0_11 = arith.constant 0 : index
    %c0_12 = arith.constant 0 : index
    %26 = vector.load %arg4[%c0_11, %c0_12] : memref<1x128xf32, #tpu.memory_space<vmem>>, vector<1x128xf32>
    %27 = vector.broadcast %26 : vector<1x128xf32> to vector<16x128xf32>
    %28 = arith.addf %25, %27 : vector<16x128xf32>
    %29 = math.tanh %28 : vector<16x128xf32>
    %c0_13 = arith.constant 0 : index
    %c0_14 = arith.constant 0 : index
    %30 = vector.load %arg5[%c0_13, %c0_14] : memref<16x128xf32, #tpu.memory_space<vmem>>, vector<16x128xf32>
    tpu.vector_store %arg5[%c0_13, %c0_14], %29 {strides = array<i32>} : memref<16x128xf32, #tpu.memory_space<vmem>>, vector<16x128xf32>,
    return
  }
  func.func @transform_0(%arg0: i32) -> (i32, i32) {
    %c0_i32 = arith.constant 0 : i32
    %c0_i32_0 = arith.constant 0 : i32
    return %arg0, %c0_i32 : i32, i32
  }
  func.func @transform_1(%arg0: i32) -> (i32, i32) {
    %c0_i32 = arith.constant 0 : i32
    %c0_i32_0 = arith.constant 0 : i32
    %c0_i32_1 = arith.constant 0 : i32
    return %c0_i32, %c0_i32_0 : i32, i32
  }
  func.func @transform_2(%arg0: i32) -> (i32, i32) {
    %c0_i32 = arith.constant 0 : i32
    %c0_i32_0 = arith.constant 0 : i32
    %c0_i32_1 = arith.constant 0 : i32
    return %c0_i32, %c0_i32_0 : i32, i32
  }
  func.func @transform_3(%arg0: i32) -> (i32, i32) {
    %c0_i32 = arith.constant 0 : i32
    %c0_i32_0 = arith.constant 0 : i32
    %c0_i32_1 = arith.constant 0 : i32
    return %c0_i32, %c0_i32_0 : i32, i32
  }
  func.func @transform_4(%arg0: i32) -> (i32, i32) {
    %c0_i32 = arith.constant 0 : i32
    %c0_i32_0 = arith.constant 0 : i32
    return %arg0, %c0_i32 : i32, i32
  }
}

module attributes {stable_mosaic.version = 11 : i64} {
  func.func @kernel(%arg0: i32, %arg1: memref<16x128xbf16, #tpu.memory_space<vmem>>, %arg2: memref<128x128xbf16, #tpu.memory_space<vmem>>, %arg3: memref<1x128xf32, #tpu.memory_space<vmem>>, %arg4: memref<1x128xf32, #tpu.memory_space<vmem>>, %arg5: memref<16x128xf32, #tpu.memory_space<vmem>>) attributes {dimension_semantics = [#tpu.dimension_semantics<parallel>], iteration_bounds = array<i64: 2>, scalar_prefetch = 0 : i64, scratch_operands = 0 : i64, tpu.core_type = #tpu.core_type<tc>, window_params = [{transform_indices = @transform_0, window_bounds = array<i64: 16, 128>}, {pipeline_mode = #tpu.pipeline_mode<synchronous>, transform_indices = @transform_1, window_bounds = array<i64: 128, 128>}, {pipeline_mode = #tpu.pipeline_mode<synchronous>, transform_indices = @transform_2, window_bounds = array<i64: 1, 128>}, {pipeline_mode = #tpu.pipeline_mode<synchronous>, transform_indices = @transform_3, window_bounds = array<i64: 1, 128>}, {transform_indices = @transform_4, window_bounds = array<i64: 16, 128>}]} {
    %c0 = arith.constant 0 : index
    %c0_0 = arith.constant 0 : index
    %0 = vector.load %arg1[%c0, %c0_0] : memref<16x128xbf16, #tpu.memory_space<vmem>>, vector<16x128xbf16>
    %c0_1 = arith.constant 0 : index
    %c0_2 = arith.constant 0 : index
    %1 = vector.load %arg2[%c0_1, %c0_2] : memref<128x128xbf16, #tpu.memory_space<vmem>>, vector<128x128xbf16>
    %cst = arith.constant dense<0.000000e+00> : vector<16x128xf32>
    %2 = tpu.matmul %0, %1, %cst {dimension_numbers = #tpu.dot_dimension_numbers<[1], [0], [0], [1], [0, 0, 1, 1], [], []>} : vector<16x128xbf16>, vector<128x128xbf16>, vector<16x128xf32> -> vector<16x128xf32>
    %cst_3 = arith.constant dense<0.000000e+00> : vector<16xf32>
    %3 = vector.multi_reduction <add>, %2, %cst_3 [1] : vector<16x128xf32> to vector<16xf32>
    %4 = vector.shape_cast %3 : vector<16xf32> to vector<16x1xf32>
    %cst_4 = arith.constant 1.562500e-02 : f32
    %5 = vector.broadcast %cst_4 : f32 to vector<16x1xf32>
    %6 = arith.mulf %4, %5 : vector<16x1xf32>
    %7 = arith.mulf %2, %2 : vector<16x128xf32>
    %cst_5 = arith.constant dense<0.000000e+00> : vector<16xf32>
    %8 = vector.multi_reduction <add>, %7, %cst_5 [1] : vector<16x128xf32> to vector<16xf32>
    %9 = vector.shape_cast %8 : vector<16xf32> to vector<16x1xf32>
    %cst_6 = arith.constant 1.562500e-02 : f32
    %10 = vector.broadcast %cst_6 : f32 to vector<16x1xf32>
    %11 = arith.mulf %9, %10 : vector<16x1xf32>
    %12 = arith.mulf %6, %6 : vector<16x1xf32>
    %13 = arith.subf %11, %12 : vector<16x1xf32>
    %cst_7 = arith.constant 0.000000e+00 : f32
    %14 = vector.broadcast %cst_7 : f32 to vector<16x1xf32>
    %15 = arith.maximumf %13, %14 : vector<16x1xf32>
    %cst_8 = arith.constant 9.99999974E-6 : f32
    %16 = vector.broadcast %cst_8 : f32 to vector<16x1xf32>
    %17 = arith.addf %15, %16 : vector<16x1xf32>
    %18 = math.rsqrt %17 : vector<16x1xf32>
    %19 = vector.broadcast %6 : vector<16x1xf32> to vector<16x128xf32>
    %20 = arith.subf %2, %19 : vector<16x128xf32>
    %21 = vector.broadcast %18 : vector<16x1xf32> to vector<16x128xf32>
    %22 = arith.mulf %20, %21 : vector<16x128xf32>
    %c0_9 = arith.constant 0 : index
    %c0_10 = arith.constant 0 : index
    %23 = vector.load %arg3[%c0_9, %c0_10] : memref<1x128xf32, #tpu.memory_space<vmem>>, vector<1x128xf32>
    %24 = vector.broadcast %23 : vector<1x128xf32> to vector<16x128xf32>
    %25 = arith.mulf %22, %24 : vector<16x128xf32>
    %c0_11 = arith.constant 0 : index
    %c0_12 = arith.constant 0 : index
    %26 = vector.load %arg4[%c0_11, %c0_12] : memref<1x128xf32, #tpu.memory_space<vmem>>, vector<1x128xf32>
    %27 = vector.broadcast %26 : vector<1x128xf32> to vector<16x128xf32>
    %28 = arith.addf %25, %27 : vector<16x128xf32>
    %29 = math.tanh %28 : vector<16x128xf32>
    %c0_13 = arith.constant 0 : index
    %c0_14 = arith.constant 0 : index
    %30 = vector.load %arg5[%c0_13, %c0_14] : memref<16x128xf32, #tpu.memory_space<vmem>>, vector<16x128xf32>
    tpu.vector_store %arg5[%c0_13, %c0_14], %29 {strides = array<i32>} : memref<16x128xf32, #tpu.memory_space<vmem>>, vector<16x128xf32>,
    return
  }
  func.func @transform_0(%arg0: i32) -> (i32, i32) {
    %c0_i32 = arith.constant 0 : i32
    %c0_i32_0 = arith.constant 0 : i32
    return %arg0, %c0_i32 : i32, i32
  }
  func.func @transform_1(%arg0: i32) -> (i32, i32) {
    %c0_i32 = arith.constant 0 : i32
    %c0_i32_0 = arith.constant 0 : i32
    %c0_i32_1 = arith.constant 0 : i32
    return %c0_i32, %c0_i32_0 : i32, i32
  }
  func.func @transform_2(%arg0: i32) -> (i32, i32) {
    %c0_i32 = arith.constant 0 : i32
    %c0_i32_0 = arith.constant 0 : i32
    %c0_i32_1 = arith.constant 0 : i32
    return %c0_i32, %c0_i32_0 : i32, i32
  }
  func.func @transform_3(%arg0: i32) -> (i32, i32) {
    %c0_i32 = arith.constant 0 : i32
    %c0_i32_0 = arith.constant 0 : i32
    %c0_i32_1 = arith.constant 0 : i32
    return %c0_i32, %c0_i32_0 : i32, i32
  }
  func.func @transform_4(%arg0: i32) -> (i32, i32) {
    %c0_i32 = arith.constant 0 : i32
    %c0_i32_0 = arith.constant 0 : i32
    return %arg0, %c0_i32 : i32, i32
  }
}

</mosaic_0001>

<llo_original>
// kernel: tpu_custom_call.1
$region0: #{tpu_custom_call.1}
  #allocation0 [shape = 'u32[]', space=smem, size = 0x4, offset = 0x4, fixed_abs, tag = 'smem constant byte address 0x4 - core index']
  #allocation1 [shape = 'u32[144,128]{1,0:T(1,128)}', space=vmem, size = 0x12000, scoped, tag = 'internal scratch']
  %s0 = inlined_call_operand.hbm [shape: bf16[32,128], index: 0, kind: input, shape index: {}]
  %s1 = inlined_call_operand.hbm [shape: bf16[128,128], index: 1, kind: input, shape index: {}]
  %s2 = inlined_call_operand.vmem [shape: f32[1,128], index: 2, kind: input, shape index: {}]
  %s3 = inlined_call_operand.vmem [shape: f32[1,128], index: 3, kind: input, shape index: {}]
  %s4 = inlined_call_operand.hbm [shape: f32[32,128], index: 4, kind: output, shape index: {}]
  %s5 = sld [smem:[#allocation0]]
  $region57: #{tpu_custom_call.1} parent=0
    _
  %s7 = ssub.s32 1, %s5
  %s8 = scalar_select 0, %s7, %s5
  $region1: #{tpu_custom_call.1} parent=0
    #allocation2 [shape = 'u8[8192]{0}', space=vmem, size = 0x2000, scoped, tag = 'input window, operand 0']
    #allocation3 [shape = 's32[2]{0}', space=sflag, size = 0x8, scoped, tag = 'scoped memory for tpu_custom_call.1']
    #allocation4 [shape = 's32[2]{0}', space=sflag, size = 0x8, scoped, tag = 'scoped memory for tpu_custom_call.1']
    #allocation5 [shape = 'u8[32768]{0}', space=vmem, size = 0x8000, scoped, tag = 'input window, operand 1, single buffered']
    #allocation6 [shape = 's32[1]{0}', space=sflag, size = 0x4, scoped, tag = 'scoped memory for tpu_custom_call.1']
    #allocation7 [shape = 'u8[16384]{0}', space=vmem, size = 0x4000, scoped, tag = 'output window, operand 0']
    %9 = vsyncpa [#allocation3], 0
    %s10 = scalar_lea.sflag [#allocation3], 1
    %11 = vsyncpa %s10, 0
    %12 = vsyncpa [#allocation6], 0
    %13 = vsyncpa [#allocation4], 0
    %s14 = scalar_lea.sflag [#allocation4], 1
    %15 = vsyncpa %s14, 0
    loop: start=0, step=1, limit=4
    $region2: #{tpu_custom_call.1} parent=1 // loop_pre_header
      _
    $region3: #{tpu_custom_call.1} parent=1 // loop_header
      %s17 = sphi 0, %s21
      %p18 = scmp.ge.s32.totalorder %s17, 4
      %s27 = sphi 0, %s29
      %s30 = sphi 0, %s27
      %s31 = sphi 0, %s30
      %s47 = sphi 0, %s31
      %s51 = sphi 0, %s51
      %s53 = sphi 0, %s51
      %s54 = sphi 0, %s53
      %s68 = sphi 0, %s54
      %s72 = sphi 0, %s72
      %s74 = sphi 0, %s72
      %s75 = sphi 0, %s74
      %s89 = sphi 0, %s75
      %s93 = sphi 0, %s93
      %s95 = sphi 0, %s93
      %s96 = sphi 0, %s95
      %s110 = sphi 0, %s96
      %s116 = sphi 0, %s118
      %s119 = sphi 0, %s116
      %s120 = sphi 0, %s119
      %s136 = sphi 0, %s120
    $region4: #{tpu_custom_call.1} parent=1 // loop_header_branch
      %20 = sbr.rel (%p18) target = $region8
    $region5: #{tpu_custom_call.1} parent=1 // loop_body
      %s22 = ssub.s32 %s17, 1
      %s23 = ssub.s32 %s17, 2
      %s24 = sadd.s32 %s17, 1
      %s25 = ssub.s32 %s17, %s24
      %p26 = scmp.eq.s32.totalorder %s25, 0
      %s28 = sadd.s32 %s27, 1
      %s29 = scalar_select %p26, %s27, %s28
      %p32 = pneg %p26
      %p33 = scmp.eq.s32.totalorder %s17, 1
      %p34 = por %p32, %p33
      %p35 = scmp.ne.s32.totalorder %s27, %s30
      %p36 = scmp.eq.s32.totalorder %s17, 0
      %p37 = por %p35, %p36
      %p38 = scmp.ne.s32.totalorder %s27, %s30
      %p39 = scmp.eq.s32.totalorder %s22, 1
      %p40 = por %p38, %p39
      %p41 = scmp.ne.s32.totalorder %s30, %s31
      %p42 = scmp.eq.s32.totalorder %s22, 0
      %p43 = por %p41, %p42
      %p44 = scmp.ne.s32.totalorder %s30, %s31
      %p45 = scmp.eq.s32.totalorder %s23, 1
      %p46 = por %p44, %p45
      %p48 = scmp.ne.s32.totalorder %s31, %s47
      %p49 = scmp.eq.s32.totalorder %s23, 0
      %p50 = por %p48, %p49
      %s52 = sadd.s32 %s51, 1
      %p55 = scmp.eq.s32.totalorder %s17, 1
      %p56 = scmp.ne.s32.totalorder %s51, %s53
      %p57 = scmp.eq.s32.totalorder %s17, 0
      %p58 = por %p56, %p57
      %p59 = scmp.ne.s32.totalorder %s51, %s53
      %p60 = scmp.eq.s32.totalorder %s22, 1
      %p61 = por %p59, %p60
      %p62 = scmp.ne.s32.totalorder %s53, %s54
      %p63 = scmp.eq.s32.totalorder %s22, 0
      %p64 = por %p62, %p63
      %p65 = scmp.ne.s32.totalorder %s53, %s54
      %p66 = scmp.eq.s32.totalorder %s23, 1
      %p67 = por %p65, %p66
      %p69 = scmp.ne.s32.totalorder %s54, %s68
      %p70 = scmp.eq.s32.totalorder %s23, 0
      %p71 = por %p69, %p70
      %s73 = sadd.s32 %s72, 1
      %p76 = scmp.eq.s32.totalorder %s17, 1
      %p77 = scmp.ne.s32.totalorder %s72, %s74
      %p78 = scmp.eq.s32.totalorder %s17, 0
      %p79 = por %p77, %p78
      %p80 = scmp.ne.s32.totalorder %s72, %s74
      %p81 = scmp.eq.s32.totalorder %s22, 1
      %p82 = por %p80, %p81
      %p83 = scmp.ne.s32.totalorder %s74, %s75
      %p84 = scmp.eq.s32.totalorder %s22, 0
      %p85 = por %p83, %p84
      %p86 = scmp.ne.s32.totalorder %s74, %s75
      %p87 = scmp.eq.s32.totalorder %s23, 1
      %p88 = por %p86, %p87
      %p90 = scmp.ne.s32.totalorder %s75, %s89
      %p91 = scmp.eq.s32.totalorder %s23, 0
      %p92 = por %p90, %p91
      %s94 = sadd.s32 %s93, 1
      %p97 = scmp.eq.s32.totalorder %s17, 1
      %p98 = scmp.ne.s32.totalorder %s93, %s95
      %p99 = scmp.eq.s32.totalorder %s17, 0
      %p100 = por %p98, %p99
      %p101 = scmp.ne.s32.totalorder %s93, %s95
      %p102 = scmp.eq.s32.totalorder %s22, 1
      %p103 = por %p101, %p102
      %p104 = scmp.ne.s32.totalorder %s95, %s96
      %p105 = scmp.eq.s32.totalorder %s22, 0
      %p106 = por %p104, %p105
      %p107 = scmp.ne.s32.totalorder %s95, %s96
      %p108 = scmp.eq.s32.totalorder %s23, 1
      %p109 = por %p107, %p108
      %p111 = scmp.ne.s32.totalorder %s96, %s110
      %p112 = scmp.eq.s32.totalorder %s23, 0
      %p113 = por %p111, %p112
      %s114 = ssub.s32 %s17, %s24
      %p115 = scmp.eq.s32.totalorder %s114, 0
      %s117 = sadd.s32 %s116, 1
      %s118 = scalar_select %p115, %s116, %s117
      %p121 = pneg %p115
      %p122 = scmp.eq.s32.totalorder %s17, 1
      %p123 = por %p121, %p122
      %p124 = scmp.ne.s32.totalorder %s116, %s119
      %p125 = scmp.eq.s32.totalorder %s17, 0
      %p126 = por %p124, %p125
      %p127 = scmp.ne.s32.totalorder %s116, %s119
      %p128 = scmp.eq.s32.totalorder %s22, 1
      %p129 = por %p127, %p128
      %p130 = scmp.ne.s32.totalorder %s119, %s120
      %p131 = scmp.eq.s32.totalorder %s22, 0
      %p132 = por %p130, %p131
      %p133 = scmp.ne.s32.totalorder %s119, %s120
      %p134 = scmp.eq.s32.totalorder %s23, 1
      %p135 = por %p133, %p134
      %p137 = scmp.ne.s32.totalorder %s120, %s136
      %p138 = scmp.eq.s32.totalorder %s23, 0
      %p139 = por %p137, %p138
      %p140 = scmp.le.s32.totalorder 1, %s17
      %p141 = scmp.lt.s32.totalorder %s17, 3
      %p142 = pnand %p140, %p141
      %p143 = pneg %p142
      // Predicated region
      $region9: #{tpu_custom_call.1} parent=5 // pred_check
        _
      $region10: #{tpu_custom_call.1} parent=5 // pred_check_branch
        %145 = sbr.rel (%p142) target = $region12
      $region11: #{tpu_custom_call.1} parent=5 // pred_region
        %s146 = ssub.s32 %s17, 1
        // Predicated region
        $region13: #{tpu_custom_call.1} parent=11 // pred_check
          %p147 = pneg %p64
        $region14: #{tpu_custom_call.1} parent=11 // pred_check_branch
          %149 = sbr.rel (%p147) target = $region16
        $region15: #{tpu_custom_call.1} parent=11 // pred_region
          %s151 = ssub.s32 1024, 1024
          %152 = vsyncadd [#allocation6], %s151
          %s153 = sshll.u32 [#allocation5], 4
          %s154 = int_to_ptr.vmem [resolvable:$true] %s153
          %159 = dma.hbm_to_vmem [thread:$0]  %s1, 1024, %s154, [#allocation6], 64, 64, 4
        $region16: #{tpu_custom_call.1} parent=11 // pred_fallthru
          _
        // Predicated region
        $region17: #{tpu_custom_call.1} parent=11 // pred_check
          %p160 = pneg %p85
        $region18: #{tpu_custom_call.1} parent=11 // pred_check_branch
          %162 = sbr.rel (%p160) target = $region20
        $region19: #{tpu_custom_call.1} parent=11 // pred_region
          _
        $region20: #{tpu_custom_call.1} parent=11 // pred_fallthru
          _
        // Predicated region
        $region21: #{tpu_custom_call.1} parent=11 // pred_check
          %p163 = pneg %p106
        $region22: #{tpu_custom_call.1} parent=11 // pred_check_branch
          %165 = sbr.rel (%p163) target = $region24
        $region23: #{tpu_custom_call.1} parent=11 // pred_region
          _
        $region24: #{tpu_custom_call.1} parent=11 // pred_fallthru
          _
      $region12: #{tpu_custom_call.1} parent=5 // pred_fallthru
        _
      %p166 = scmp.lt.s32.totalorder %s17, 2
      // Predicated region
      $region25: #{tpu_custom_call.1} parent=5 // pred_check
        %p167 = pneg %p166
      $region26: #{tpu_custom_call.1} parent=5 // pred_check_branch
        %169 = sbr.rel (%p167) target = $region28
      $region27: #{tpu_custom_call.1} parent=5 // pred_region
        // Predicated region
        $region29: #{tpu_custom_call.1} parent=27 // pred_check
          %p170 = pneg %p37
        $region30: #{tpu_custom_call.1} parent=27 // pred_check_branch
          %172 = sbr.rel (%p170) target = $region32
        $region31: #{tpu_custom_call.1} parent=27 // pred_region
          %s173 = sand.u32 %s27, 1
          %s174 = scalar_lea.sflag [#allocation3], %s173
          %s175 = sand.u32 %s27, 1
          %s176 = smul.addr %s175, 8
          %s177 = scalar_lea.vmem [#allocation2], %s176
          %s178 = smul.u32 2, %s17
          %s180 = ssub.s32 128, 128
          %181 = vsyncadd %s174, %s180
          %s182 = smul.addr %s178, 64
          %s183 = scalar_lea.hbm %s0, %s182
          %s184 = sshll.u32 %s177, 4
          %s185 = int_to_ptr.vmem [resolvable:$true] %s184
          %190 = dma.hbm_to_vmem [thread:$0]  %s183, 128, %s185, %s174, 64, 64, 4
        $region32: #{tpu_custom_call.1} parent=27 // pred_fallthru
          _
      $region28: #{tpu_custom_call.1} parent=5 // pred_fallthru
        _
      %p191 = scmp.le.s32.totalorder 1, %s17
      %p192 = scmp.lt.s32.totalorder %s17, 3
      %p193 = pnand %p191, %p192
      %p194 = pneg %p193
      // Predicated region
      $region33: #{tpu_custom_call.1} parent=5 // pred_check
        _
      $region34: #{tpu_custom_call.1} parent=5 // pred_check_branch
        %196 = sbr.rel (%p193) target = $region36
      $region35: #{tpu_custom_call.1} parent=5 // pred_region
        %s197 = ssub.s32 %s17, 1
        %s198 = sand.u32 %s30, 1
        %s199 = scalar_lea.sflag [#allocation3], %s198
        %s200 = sand.u32 %s30, 1
        %s201 = smul.addr %s200, 8
        %s202 = scalar_lea.vmem [#allocation2], %s201
        // Predicated region
        $region37: #{tpu_custom_call.1} parent=35 // pred_check
          %p203 = pneg %p43
        $region38: #{tpu_custom_call.1} parent=35 // pred_check_branch
          %205 = sbr.rel (%p203) target = $region40
        $region39: #{tpu_custom_call.1} parent=35 // pred_region
          %206 = dma.done %s199, 128
        $region40: #{tpu_custom_call.1} parent=35 // pred_fallthru
          _
        // Predicated region
        $region41: #{tpu_custom_call.1} parent=35 // pred_check
          %p207 = pneg %p64
        $region42: #{tpu_custom_call.1} parent=35 // pred_check_branch
          %209 = sbr.rel (%p207) target = $region44
        $region43: #{tpu_custom_call.1} parent=35 // pred_region
          %210 = dma.done [#allocation6], 1024
        $region44: #{tpu_custom_call.1} parent=35 // pred_fallthru
          _
        %s211 = sand.u32 %s30, 1
        %s212 = scalar_lea.sflag [#allocation3], %s211
        %s213 = sand.u32 %s30, 1
        %s214 = smul.addr %s213, 8
        %s215 = scalar_lea.vmem [#allocation2], %s214
        %p216 = pneg %p43
        %p217 = pneg %p40
        %p218 = pneg %p64
        %p219 = pneg %p61
        %p220 = pneg %p85
        %p221 = pneg %p82
        %p222 = pneg %p106
        %p223 = pneg %p103
        %p224 = pneg %p132
        %p225 = pneg %p129
        %s226 = sand.u32 %s119, 1
        %s227 = scalar_lea.sflag [#allocation4], %s226
        %s228 = sand.u32 %s119, 1
        %s229 = smul.addr %s228, 16
        %s230 = scalar_lea.vmem [#allocation7], %s229
        %s231 = smul.u32 2, %s22
        %s232 = smul.u32 2, %s22
        %v234 = vld [vmem:[%s202] sm:$0xf]
        %v235 = vld [vmem:[%s202 + $0x4] sm:$0xf]
        %v236 = vld [vmem:[#allocation5] sm:$0xf]
        %v237 = vld [vmem:[#allocation5 + $0x4] sm:$0xf]
        %v238 = vld [vmem:[#allocation5 + $0x8] sm:$0xf]
        %v239 = vld [vmem:[#allocation5 + $0xc] sm:$0xf]
        %v240 = vld [vmem:[#allocation5 + $0x10] sm:$0xf]
        %v241 = vld [vmem:[#allocation5 + $0x14] sm:$0xf]
        %v242 = vld [vmem:[#allocation5 + $0x18] sm:$0xf]
        %v243 = vld [vmem:[#allocation5 + $0x1c] sm:$0xf]
        %v244 = vld [vmem:[#allocation5 + $0x20] sm:$0xf]
        %v245 = vld [vmem:[#allocation5 + $0x24] sm:$0xf]
        %v246 = vld [vmem:[#allocation5 + $0x28] sm:$0xf]
        %v247 = vld [vmem:[#allocation5 + $0x2c] sm:$0xf]
        %v248 = vld [vmem:[#allocation5 + $0x30] sm:$0xf]
        %v249 = vld [vmem:[#allocation5 + $0x34] sm:$0xf]
        %v250 = vld [vmem:[#allocation5 + $0x38] sm:$0xf]
        %v251 = vld [vmem:[#allocation5 + $0x3c] sm:$0xf]
        %v254 = vunpack.c.l.b16 %v234
        %v255 = vunpack.c.l.b16 %v235
        %v256 = vpack.c.b16 %v255, %v254
        %v274 = vunpack.c.l.b16 %v236
        %v275 = vunpack.c.l.b16 %v237
        %v276 = vunpack.c.l.b16 %v238
        %v277 = vunpack.c.l.b16 %v239
        %v278 = vunpack.c.l.b16 %v240
        %v279 = vunpack.c.l.b16 %v241
        %v280 = vunpack.c.l.b16 %v242
        %v281 = vunpack.c.l.b16 %v243
        %v282 = vunpack.c.l.b16 %v244
        %v283 = vunpack.c.l.b16 %v245
        %v284 = vunpack.c.l.b16 %v246
        %v285 = vunpack.c.l.b16 %v247
        %v286 = vunpack.c.l.b16 %v248
        %v287 = vunpack.c.l.b16 %v249
        %v288 = vunpack.c.l.b16 %v250
        %v289 = vunpack.c.l.b16 %v251
        %v290 = vpack.c.b16 %v275, %v274
        %v291 = vpack.c.b16 %v277, %v276
        %v292 = vpack.c.b16 %v279, %v278
        %v293 = vpack.c.b16 %v281, %v280
        %v294 = vpack.c.b16 %v283, %v282
        %v295 = vpack.c.b16 %v285, %v284
        %v296 = vpack.c.b16 %v287, %v286
        %v297 = vpack.c.b16 %v289, %v288
        %306 = vmatprep.subr.bf16.mxu0 0
        %307 = vmatpush1.bf16.msra.mxu0 %v297
        %308 = vmatprep.subr.bf16.mxu0 0
        %309 = vmatpush1.bf16.msra.mxu0 %v296
        %310 = vmatprep.subr.bf16.mxu0 0
        %311 = vmatpush1.bf16.msra.mxu0 %v295
        %312 = vmatprep.subr.bf16.mxu0 0
        %313 = vmatpush1.bf16.msra.mxu0 %v294
        %314 = vmatprep.subr.bf16.mxu0 0
        %315 = vmatpush1.bf16.msra.mxu0 %v293
        %316 = vmatprep.subr.bf16.mxu0 0
        %317 = vmatpush1.bf16.msra.mxu0 %v292
        %318 = vmatprep.subr.bf16.mxu0 0
        %319 = vmatpush1.bf16.msra.mxu0 %v291
        %320 = vmatprep.subr.bf16.mxu0 0
        %321 = vmatpush1.bf16.msra.mxu0 %v290
        %322 = vmatprep.subr.bf16.mxu0 0
        %323 = vmatpush2.bf16.msra.mxu0 0
        %324 = vmatprep.subr.bf16.mxu0 0
        %325 = vmatpush2.bf16.msra.mxu0 0
        %326 = vmatprep.subr.bf16.mxu0 0
        %327 = vmatpush2.bf16.msra.mxu0 0
        %328 = vmatprep.subr.bf16.mxu0 0
        %329 = vmatpush2.bf16.msra.mxu0 0
        %330 = vmatprep.subr.bf16.mxu0 0
        %331 = vmatpush2.bf16.msra.mxu0 0
        %332 = vmatprep.subr.bf16.mxu0 0
        %333 = vmatpush2.bf16.msra.mxu0 0
        %334 = vmatprep.subr.bf16.mxu0 0
        %335 = vmatpush2.bf16.msra.mxu0 0
        %336 = vmatprep.subr.bf16.mxu0 0
        %337 = vmatpush2.bf16.msra.mxu0 0
        %338 = vmatprep.mubr.bf16.mxu0 0
        %339 = vmatmul.mubr.bf16.gmra.mxu0 %v256
        %v340 = vpop.f32.mrf.mxu0
        %v341 = vadd.f32 0.0, %v340
        %v342 = vpop.f32.mrf.mxu0
        %v343 = vpop.f32.mrf.mxu0
        %v344 = vadd.f32 0.0, %v343
        %v345 = vpop.f32.mrf.mxu0
        %346 = vdwg.mxu0
        %347 = vadd.xlane.f32.xlu0 %v341
        %v348 = vpop.xlane.xlu0 %347
        %349 = vadd.xlane.f32.xlu0 %v344
        %v350 = vpop.xlane.xlu0 %349
        %v351 = vmul.f32 %v348, 0.015625
        %v352 = vmul.f32 %v350, 0.015625
        %v353 = vmul.f32 %v341, %v341
        %v354 = vmul.f32 %v344, %v344
        %355 = vadd.xlane.f32.xlu0 %v353
        %v356 = vpop.xlane.xlu0 %355
        %357 = vadd.xlane.f32.xlu0 %v354
        %v358 = vpop.xlane.xlu0 %357
        %v359 = vmul.f32 %v356, 0.015625
        %v360 = vmul.f32 %v358, 0.015625
        %v361 = vmul.f32 %v351, %v351
        %v362 = vmul.f32 %v352, %v352
        %v363 = vsub.f32 %v359, %v361
        %v364 = vsub.f32 %v360, %v362
        %v365 = vmax.f32 %v363, 0.0
        %v366 = vmax.f32 %v364, 0.0
        %v367 = vadd.f32 %v365, 1e-05
        %v368 = vadd.f32 %v366, 1e-05
        %v369 = vrsqrt.pop %v367
        %v370 = vrsqrt.pop %v368
        %v371 = vsub.f32 %v341, %v351
        %v372 = vsub.f32 %v344, %v352
        %v373 = vmul.f32 %v371, %v369
        %v374 = vmul.f32 %v372, %v370
        %v375 = vld [vmem:[%s2] sm:$0x1]
        %v377 = vlaneseq
        %v378 = vshrl.u32 %v377, 7
        %v379 = vsub.s32 0, %v378
        %v380 = vrot.slane %v375, %v379
        %v382 = vmul.f32 %v373, %v380
        %v383 = vmul.f32 %v374, %v380
        %v384 = vld [vmem:[%s3] sm:$0x1]
        %v386 = vlaneseq
        %v387 = vshrl.u32 %v386, 7
        %v388 = vsub.s32 0, %v387
        %v389 = vrot.slane %v384, %v388
        %v391 = vadd.f32 %v382, %v389
        %v392 = vadd.f32 %v383, %v389
        %v393 = vtanh.pop %v391
        %v394 = vtanh.pop %v392
        %395 = vst [vmem:[%s230] sm:$0xff] %v393
        %396 = vst [vmem:[%s230 + $0x8] sm:$0xff] %v394
        %s397 = sand.u32 %s119, 1
        %s398 = scalar_lea.sflag [#allocation4], %s397
        %s399 = sand.u32 %s119, 1
        %s400 = smul.addr %s399, 16
        %s401 = scalar_lea.vmem [#allocation7], %s400
        // Predicated region
        $region45: #{tpu_custom_call.1} parent=35 // pred_check
          %p402 = pneg %p129
        $region46: #{tpu_custom_call.1} parent=35 // pred_check_branch
          %404 = sbr.rel (%p402) target = $region48
        $region47: #{tpu_custom_call.1} parent=35 // pred_region
          %s405 = smul.u32 2, %s22
          %s407 = ssub.s32 256, 256
          %408 = vsyncadd %s398, %s407
          %s409 = smul.addr %s405, 128
          %s410 = scalar_lea.hbm %s4, %s409
          %s411 = sshll.u32 %s401, 4
          %s412 = int_to_ptr.vmem [resolvable:$true] %s411
          %417 = dma.vmem_to_hbm [thread:$0]  %s412, 256, %s410, %s398, 128, 128, 8
        $region48: #{tpu_custom_call.1} parent=35 // pred_fallthru
          _
      $region36: #{tpu_custom_call.1} parent=5 // pred_fallthru
        _
      %p418 = scmp.le.s32.totalorder 2, %s17
      // Predicated region
      $region49: #{tpu_custom_call.1} parent=5 // pred_check
        %p419 = pneg %p418
      $region50: #{tpu_custom_call.1} parent=5 // pred_check_branch
        %421 = sbr.rel (%p419) target = $region52
      $region51: #{tpu_custom_call.1} parent=5 // pred_region
        %s422 = ssub.s32 %s17, 2
        // Predicated region
        $region53: #{tpu_custom_call.1} parent=51 // pred_check
          %p423 = pneg %p135
        $region54: #{tpu_custom_call.1} parent=51 // pred_check_branch
          %425 = sbr.rel (%p423) target = $region56
        $region55: #{tpu_custom_call.1} parent=51 // pred_region
          %s426 = sand.u32 %s120, 1
          %s427 = scalar_lea.sflag [#allocation4], %s426
          %s428 = sand.u32 %s120, 1
          %s429 = smul.addr %s428, 16
          %s430 = scalar_lea.vmem [#allocation7], %s429
          %431 = dma.done %s427, 256
        $region56: #{tpu_custom_call.1} parent=51 // pred_fallthru
          _
      $region52: #{tpu_custom_call.1} parent=5 // pred_fallthru
        _
    $region6: #{tpu_custom_call.1} parent=1 // loop_footer
      %s21 = sadd.s32 1, %s17
    $region7: #{tpu_custom_call.1} parent=1 // loop_footer_branch
      %16 = sbr.rel target = $region3
    $region8: #{tpu_custom_call.1} parent=1 // loop_exit
      _
    %432 = vsyncpa [#allocation3], 1
    %s433 = scalar_lea.sflag [#allocation3], 1
    %434 = vsyncpa %s433, 1
    %435 = vsyncpa [#allocation6], 1
    %436 = vsyncpa [#allocation4], 1
    %s437 = scalar_lea.sflag [#allocation4], 1
    %438 = vsyncpa %s437, 1

// kernel: tpu_custom_call.1
$region0: #{tpu_custom_call.1}
  #allocation0 [shape = 'u32[]', space=smem, size = 0x4, offset = 0x4, fixed_abs, tag = 'smem constant byte address 0x4 - core index']
  #allocation1 [shape = 'u32[144,128]{1,0:T(1,128)}', space=vmem, size = 0x12000, scoped, tag = 'internal scratch']
  %s0 = inlined_call_operand.hbm [shape: bf16[32,128], index: 0, kind: input, shape index: {}]
  %s1 = inlined_call_operand.hbm [shape: bf16[128,128], index: 1, kind: input, shape index: {}]
  %s2 = inlined_call_operand.vmem [shape: f32[1,128], index: 2, kind: input, shape index: {}]
  %s3 = inlined_call_operand.vmem [shape: f32[1,128], index: 3, kind: input, shape index: {}]
  %s4 = inlined_call_operand.hbm [shape: f32[32,128], index: 4, kind: output, shape index: {}]
  %s5 = sld [smem:[#allocation0]]
  $region57: #{tpu_custom_call.1} parent=0
    _
  %s7 = ssub.s32 1, %s5
  %s8 = scalar_select 0, %s7, %s5
  $region1: #{tpu_custom_call.1} parent=0
    #allocation2 [shape = 'u8[8192]{0}', space=vmem, size = 0x2000, scoped, tag = 'input window, operand 0']
    #allocation3 [shape = 's32[2]{0}', space=sflag, size = 0x8, scoped, tag = 'scoped memory for tpu_custom_call.1']
    #allocation4 [shape = 's32[2]{0}', space=sflag, size = 0x8, scoped, tag = 'scoped memory for tpu_custom_call.1']
    #allocation5 [shape = 'u8[32768]{0}', space=vmem, size = 0x8000, scoped, tag = 'input window, operand 1, single buffered']
    #allocation6 [shape = 's32[1]{0}', space=sflag, size = 0x4, scoped, tag = 'scoped memory for tpu_custom_call.1']
    #allocation7 [shape = 'u8[16384]{0}', space=vmem, size = 0x4000, scoped, tag = 'output window, operand 0']
    %9 = vsyncpa [#allocation3], 0
    %s10 = scalar_lea.sflag [#allocation3], 1
    %11 = vsyncpa %s10, 0
    %12 = vsyncpa [#allocation6], 0
    %13 = vsyncpa [#allocation4], 0
    %s14 = scalar_lea.sflag [#allocation4], 1
    %15 = vsyncpa %s14, 0
    loop: start=0, step=1, limit=4
    $region2: #{tpu_custom_call.1} parent=1 // loop_pre_header
      _
    $region3: #{tpu_custom_call.1} parent=1 // loop_header
      %s17 = sphi 0, %s21
      %p18 = scmp.ge.s32.totalorder %s17, 4
      %s27 = sphi 0, %s29
      %s30 = sphi 0, %s27
      %s31 = sphi 0, %s30
      %s47 = sphi 0, %s31
      %s51 = sphi 0, %s51
      %s53 = sphi 0, %s51
      %s54 = sphi 0, %s53
      %s68 = sphi 0, %s54
      %s72 = sphi 0, %s72
      %s74 = sphi 0, %s72
      %s75 = sphi 0, %s74
      %s89 = sphi 0, %s75
      %s93 = sphi 0, %s93
      %s95 = sphi 0, %s93
      %s96 = sphi 0, %s95
      %s110 = sphi 0, %s96
      %s116 = sphi 0, %s118
      %s119 = sphi 0, %s116
      %s120 = sphi 0, %s119
      %s136 = sphi 0, %s120
    $region4: #{tpu_custom_call.1} parent=1 // loop_header_branch
      %20 = sbr.rel (%p18) target = $region8
    $region5: #{tpu_custom_call.1} parent=1 // loop_body
      %s22 = ssub.s32 %s17, 1
      %s23 = ssub.s32 %s17, 2
      %s24 = sadd.s32 %s17, 1
      %s25 = ssub.s32 %s17, %s24
      %p26 = scmp.eq.s32.totalorder %s25, 0
      %s28 = sadd.s32 %s27, 1
      %s29 = scalar_select %p26, %s27, %s28
      %p32 = pneg %p26
      %p33 = scmp.eq.s32.totalorder %s17, 1
      %p34 = por %p32, %p33
      %p35 = scmp.ne.s32.totalorder %s27, %s30
      %p36 = scmp.eq.s32.totalorder %s17, 0
      %p37 = por %p35, %p36
      %p38 = scmp.ne.s32.totalorder %s27, %s30
      %p39 = scmp.eq.s32.totalorder %s22, 1
      %p40 = por %p38, %p39
      %p41 = scmp.ne.s32.totalorder %s30, %s31
      %p42 = scmp.eq.s32.totalorder %s22, 0
      %p43 = por %p41, %p42
      %p44 = scmp.ne.s32.totalorder %s30, %s31
      %p45 = scmp.eq.s32.totalorder %s23, 1
      %p46 = por %p44, %p45
      %p48 = scmp.ne.s32.totalorder %s31, %s47
      %p49 = scmp.eq.s32.totalorder %s23, 0
      %p50 = por %p48, %p49
      %s52 = sadd.s32 %s51, 1
      %p55 = scmp.eq.s32.totalorder %s17, 1
      %p56 = scmp.ne.s32.totalorder %s51, %s53
      %p57 = scmp.eq.s32.totalorder %s17, 0
      %p58 = por %p56, %p57
      %p59 = scmp.ne.s32.totalorder %s51, %s53
      %p60 = scmp.eq.s32.totalorder %s22, 1
      %p61 = por %p59, %p60
      %p62 = scmp.ne.s32.totalorder %s53, %s54
      %p63 = scmp.eq.s32.totalorder %s22, 0
      %p64 = por %p62, %p63
      %p65 = scmp.ne.s32.totalorder %s53, %s54
      %p66 = scmp.eq.s32.totalorder %s23, 1
      %p67 = por %p65, %p66
      %p69 = scmp.ne.s32.totalorder %s54, %s68
      %p70 = scmp.eq.s32.totalorder %s23, 0
      %p71 = por %p69, %p70
      %s73 = sadd.s32 %s72, 1
      %p76 = scmp.eq.s32.totalorder %s17, 1
      %p77 = scmp.ne.s32.totalorder %s72, %s74
      %p78 = scmp.eq.s32.totalorder %s17, 0
      %p79 = por %p77, %p78
      %p80 = scmp.ne.s32.totalorder %s72, %s74
      %p81 = scmp.eq.s32.totalorder %s22, 1
      %p82 = por %p80, %p81
      %p83 = scmp.ne.s32.totalorder %s74, %s75
      %p84 = scmp.eq.s32.totalorder %s22, 0
      %p85 = por %p83, %p84
      %p86 = scmp.ne.s32.totalorder %s74, %s75
      %p87 = scmp.eq.s32.totalorder %s23, 1
      %p88 = por %p86, %p87
      %p90 = scmp.ne.s32.totalorder %s75, %s89
      %p91 = scmp.eq.s32.totalorder %s23, 0
      %p92 = por %p90, %p91
      %s94 = sadd.s32 %s93, 1
      %p97 = scmp.eq.s32.totalorder %s17, 1
      %p98 = scmp.ne.s32.totalorder %s93, %s95
      %p99 = scmp.eq.s32.totalorder %s17, 0
      %p100 = por %p98, %p99
      %p101 = scmp.ne.s32.totalorder %s93, %s95
      %p102 = scmp.eq.s32.totalorder %s22, 1
      %p103 = por %p101, %p102
      %p104 = scmp.ne.s32.totalorder %s95, %s96
      %p105 = scmp.eq.s32.totalorder %s22, 0
      %p106 = por %p104, %p105
      %p107 = scmp.ne.s32.totalorder %s95, %s96
      %p108 = scmp.eq.s32.totalorder %s23, 1
      %p109 = por %p107, %p108
      %p111 = scmp.ne.s32.totalorder %s96, %s110
      %p112 = scmp.eq.s32.totalorder %s23, 0
      %p113 = por %p111, %p112
      %s114 = ssub.s32 %s17, %s24
      %p115 = scmp.eq.s32.totalorder %s114, 0
      %s117 = sadd.s32 %s116, 1
      %s118 = scalar_select %p115, %s116, %s117
      %p121 = pneg %p115
      %p122 = scmp.eq.s32.totalorder %s17, 1
      %p123 = por %p121, %p122
      %p124 = scmp.ne.s32.totalorder %s116, %s119
      %p125 = scmp.eq.s32.totalorder %s17, 0
      %p126 = por %p124, %p125
      %p127 = scmp.ne.s32.totalorder %s116, %s119
      %p128 = scmp.eq.s32.totalorder %s22, 1
      %p129 = por %p127, %p128
      %p130 = scmp.ne.s32.totalorder %s119, %s120
      %p131 = scmp.eq.s32.totalorder %s22, 0
      %p132 = por %p130, %p131
      %p133 = scmp.ne.s32.totalorder %s119, %s120
      %p134 = scmp.eq.s32.totalorder %s23, 1
      %p135 = por %p133, %p134
      %p137 = scmp.ne.s32.totalorder %s120, %s136
      %p138 = scmp.eq.s32.totalorder %s23, 0
      %p139 = por %p137, %p138
      %p140 = scmp.le.s32.totalorder 1, %s17
      %p141 = scmp.lt.s32.totalorder %s17, 3
      %p142 = pnand %p140, %p141
      %p143 = pneg %p142
      // Predicated region
      $region9: #{tpu_custom_call.1} parent=5 // pred_check
        _
      $region10: #{tpu_custom_call.1} parent=5 // pred_check_branch
        %145 = sbr.rel (%p142) target = $region12
      $region11: #{tpu_custom_call.1} parent=5 // pred_region
        %s146 = ssub.s32 %s17, 1
        // Predicated region
        $region13: #{tpu_custom_call.1} parent=11 // pred_check
          %p147 = pneg %p64
        $region14: #{tpu_custom_call.1} parent=11 // pred_check_branch
          %149 = sbr.rel (%p147) target = $region16
        $region15: #{tpu_custom_call.1} parent=11 // pred_region
          %s151 = ssub.s32 1024, 1024
          %152 = vsyncadd [#allocation6], %s151
          %s153 = sshll.u32 [#allocation5], 4
          %s154 = int_to_ptr.vmem [resolvable:$true] %s153
          %159 = dma.hbm_to_vmem [thread:$0]  %s1, 1024, %s154, [#allocation6], 64, 64, 4
        $region16: #{tpu_custom_call.1} parent=11 // pred_fallthru
          _
        // Predicated region
        $region17: #{tpu_custom_call.1} parent=11 // pred_check
          %p160 = pneg %p85
        $region18: #{tpu_custom_call.1} parent=11 // pred_check_branch
          %162 = sbr.rel (%p160) target = $region20
        $region19: #{tpu_custom_call.1} parent=11 // pred_region
          _
        $region20: #{tpu_custom_call.1} parent=11 // pred_fallthru
          _
        // Predicated region
        $region21: #{tpu_custom_call.1} parent=11 // pred_check
          %p163 = pneg %p106
        $region22: #{tpu_custom_call.1} parent=11 // pred_check_branch
          %165 = sbr.rel (%p163) target = $region24
        $region23: #{tpu_custom_call.1} parent=11 // pred_region
          _
        $region24: #{tpu_custom_call.1} parent=11 // pred_fallthru
          _
      $region12: #{tpu_custom_call.1} parent=5 // pred_fallthru
        _
      %p166 = scmp.lt.s32.totalorder %s17, 2
      // Predicated region
      $region25: #{tpu_custom_call.1} parent=5 // pred_check
        %p167 = pneg %p166
      $region26: #{tpu_custom_call.1} parent=5 // pred_check_branch
        %169 = sbr.rel (%p167) target = $region28
      $region27: #{tpu_custom_call.1} parent=5 // pred_region
        // Predicated region
        $region29: #{tpu_custom_call.1} parent=27 // pred_check
          %p170 = pneg %p37
        $region30: #{tpu_custom_call.1} parent=27 // pred_check_branch
          %172 = sbr.rel (%p170) target = $region32
        $region31: #{tpu_custom_call.1} parent=27 // pred_region
          %s173 = sand.u32 %s27, 1
          %s174 = scalar_lea.sflag [#allocation3], %s173
          %s175 = sand.u32 %s27, 1
          %s176 = smul.addr %s175, 8
          %s177 = scalar_lea.vmem [#allocation2], %s176
          %s178 = smul.u32 2, %s17
          %s180 = ssub.s32 128, 128
          %181 = vsyncadd %s174, %s180
          %s182 = smul.addr %s178, 64
          %s183 = scalar_lea.hbm %s0, %s182
          %s184 = sshll.u32 %s177, 4
          %s185 = int_to_ptr.vmem [resolvable:$true] %s184
          %190 = dma.hbm_to_vmem [thread:$0]  %s183, 128, %s185, %s174, 64, 64, 4
        $region32: #{tpu_custom_call.1} parent=27 // pred_fallthru
          _
      $region28: #{tpu_custom_call.1} parent=5 // pred_fallthru
        _
      %p191 = scmp.le.s32.totalorder 1, %s17
      %p192 = scmp.lt.s32.totalorder %s17, 3
      %p193 = pnand %p191, %p192
      %p194 = pneg %p193
      // Predicated region
      $region33: #{tpu_custom_call.1} parent=5 // pred_check
        _
      $region34: #{tpu_custom_call.1} parent=5 // pred_check_branch
        %196 = sbr.rel (%p193) target = $region36
      $region35: #{tpu_custom_call.1} parent=5 // pred_region
        %s197 = ssub.s32 %s17, 1
        %s198 = sand.u32 %s30, 1
        %s199 = scalar_lea.sflag [#allocation3], %s198
        %s200 = sand.u32 %s30, 1
        %s201 = smul.addr %s200, 8
        %s202 = scalar_lea.vmem [#allocation2], %s201
        // Predicated region
        $region37: #{tpu_custom_call.1} parent=35 // pred_check
          %p203 = pneg %p43
        $region38: #{tpu_custom_call.1} parent=35 // pred_check_branch
          %205 = sbr.rel (%p203) target = $region40
        $region39: #{tpu_custom_call.1} parent=35 // pred_region
          %206 = dma.done %s199, 128
        $region40: #{tpu_custom_call.1} parent=35 // pred_fallthru
          _
        // Predicated region
        $region41: #{tpu_custom_call.1} parent=35 // pred_check
          %p207 = pneg %p64
        $region42: #{tpu_custom_call.1} parent=35 // pred_check_branch
          %209 = sbr.rel (%p207) target = $region44
        $region43: #{tpu_custom_call.1} parent=35 // pred_region
          %210 = dma.done [#allocation6], 1024
        $region44: #{tpu_custom_call.1} parent=35 // pred_fallthru
          _
        %s211 = sand.u32 %s30, 1
        %s212 = scalar_lea.sflag [#allocation3], %s211
        %s213 = sand.u32 %s30, 1
        %s214 = smul.addr %s213, 8
        %s215 = scalar_lea.vmem [#allocation2], %s214
        %p216 = pneg %p43
        %p217 = pneg %p40
        %p218 = pneg %p64
        %p219 = pneg %p61
        %p220 = pneg %p85
        %p221 = pneg %p82
        %p222 = pneg %p106
        %p223 = pneg %p103
        %p224 = pneg %p132
        %p225 = pneg %p129
        %s226 = sand.u32 %s119, 1
        %s227 = scalar_lea.sflag [#allocation4], %s226
        %s228 = sand.u32 %s119, 1
        %s229 = smul.addr %s228, 16
        %s230 = scalar_lea.vmem [#allocation7], %s229
        %s231 = smul.u32 2, %s22
        %s232 = smul.u32 2, %s22
        %v234 = vld [vmem:[%s202] sm:$0xf]
        %v235 = vld [vmem:[%s202 + $0x4] sm:$0xf]
        %v236 = vld [vmem:[#allocation5] sm:$0xf]
        %v237 = vld [vmem:[#allocation5 + $0x4] sm:$0xf]
        %v238 = vld [vmem:[#allocation5 + $0x8] sm:$0xf]
        %v239 = vld [vmem:[#allocation5 + $0xc] sm:$0xf]
        %v240 = vld [vmem:[#allocation5 + $0x10] sm:$0xf]
        %v241 = vld [vmem:[#allocation5 + $0x14] sm:$0xf]
        %v242 = vld [vmem:[#allocation5 + $0x18] sm:$0xf]
        %v243 = vld [vmem:[#allocation5 + $0x1c] sm:$0xf]
        %v244 = vld [vmem:[#allocation5 + $0x20] sm:$0xf]
        %v245 = vld [vmem:[#allocation5 + $0x24] sm:$0xf]
        %v246 = vld [vmem:[#allocation5 + $0x28] sm:$0xf]
        %v247 = vld [vmem:[#allocation5 + $0x2c] sm:$0xf]
        %v248 = vld [vmem:[#allocation5 + $0x30] sm:$0xf]
        %v249 = vld [vmem:[#allocation5 + $0x34] sm:$0xf]
        %v250 = vld [vmem:[#allocation5 + $0x38] sm:$0xf]
        %v251 = vld [vmem:[#allocation5 + $0x3c] sm:$0xf]
        %v254 = vunpack.c.l.b16 %v234
        %v255 = vunpack.c.l.b16 %v235
        %v256 = vpack.c.b16 %v255, %v254
        %v274 = vunpack.c.l.b16 %v236
        %v275 = vunpack.c.l.b16 %v237
        %v276 = vunpack.c.l.b16 %v238
        %v277 = vunpack.c.l.b16 %v239
        %v278 = vunpack.c.l.b16 %v240
        %v279 = vunpack.c.l.b16 %v241
        %v280 = vunpack.c.l.b16 %v242
        %v281 = vunpack.c.l.b16 %v243
        %v282 = vunpack.c.l.b16 %v244
        %v283 = vunpack.c.l.b16 %v245
        %v284 = vunpack.c.l.b16 %v246
        %v285 = vunpack.c.l.b16 %v247
        %v286 = vunpack.c.l.b16 %v248
        %v287 = vunpack.c.l.b16 %v249
        %v288 = vunpack.c.l.b16 %v250
        %v289 = vunpack.c.l.b16 %v251
        %v290 = vpack.c.b16 %v275, %v274
        %v291 = vpack.c.b16 %v277, %v276
        %v292 = vpack.c.b16 %v279, %v278
        %v293 = vpack.c.b16 %v281, %v280
        %v294 = vpack.c.b16 %v283, %v282
        %v295 = vpack.c.b16 %v285, %v284
        %v296 = vpack.c.b16 %v287, %v286
        %v297 = vpack.c.b16 %v289, %v288
        %306 = vmatprep.subr.bf16.mxu0 0
        %307 = vmatpush1.bf16.msra.mxu0 %v297
        %308 = vmatprep.subr.bf16.mxu0 0
        %309 = vmatpush1.bf16.msra.mxu0 %v296
        %310 = vmatprep.subr.bf16.mxu0 0
        %311 = vmatpush1.bf16.msra.mxu0 %v295
        %312 = vmatprep.subr.bf16.mxu0 0
        %313 = vmatpush1.bf16.msra.mxu0 %v294
        %314 = vmatprep.subr.bf16.mxu0 0
        %315 = vmatpush1.bf16.msra.mxu0 %v293
        %316 = vmatprep.subr.bf16.mxu0 0
        %317 = vmatpush1.bf16.msra.mxu0 %v292
        %318 = vmatprep.subr.bf16.mxu0 0
        %319 = vmatpush1.bf16.msra.mxu0 %v291
        %320 = vmatprep.subr.bf16.mxu0 0
        %321 = vmatpush1.bf16.msra.mxu0 %v290
        %322 = vmatprep.subr.bf16.mxu0 0
        %323 = vmatpush2.bf16.msra.mxu0 0
        %324 = vmatprep.subr.bf16.mxu0 0
        %325 = vmatpush2.bf16.msra.mxu0 0
        %326 = vmatprep.subr.bf16.mxu0 0
        %327 = vmatpush2.bf16.msra.mxu0 0
        %328 = vmatprep.subr.bf16.mxu0 0
        %329 = vmatpush2.bf16.msra.mxu0 0
        %330 = vmatprep.subr.bf16.mxu0 0
        %331 = vmatpush2.bf16.msra.mxu0 0
        %332 = vmatprep.subr.bf16.mxu0 0
        %333 = vmatpush2.bf16.msra.mxu0 0
        %334 = vmatprep.subr.bf16.mxu0 0
        %335 = vmatpush2.bf16.msra.mxu0 0
        %336 = vmatprep.subr.bf16.mxu0 0
        %337 = vmatpush2.bf16.msra.mxu0 0
        %338 = vmatprep.mubr.bf16.mxu0 0
        %339 = vmatmul.mubr.bf16.gmra.mxu0 %v256
        %v340 = vpop.f32.mrf.mxu0
        %v341 = vadd.f32 0.0, %v340
        %v342 = vpop.f32.mrf.mxu0
        %v343 = vpop.f32.mrf.mxu0
        %v344 = vadd.f32 0.0, %v343
        %v345 = vpop.f32.mrf.mxu0
        %346 = vdwg.mxu0
        %347 = vadd.xlane.f32.xlu0 %v341
        %v348 = vpop.xlane.xlu0 %347
        %349 = vadd.xlane.f32.xlu0 %v344
        %v350 = vpop.xlane.xlu0 %349
        %v351 = vmul.f32 %v348, 0.015625
        %v352 = vmul.f32 %v350, 0.015625
        %v353 = vmul.f32 %v341, %v341
        %v354 = vmul.f32 %v344, %v344
        %355 = vadd.xlane.f32.xlu0 %v353
        %v356 = vpop.xlane.xlu0 %355
        %357 = vadd.xlane.f32.xlu0 %v354
        %v358 = vpop.xlane.xlu0 %357
        %v359 = vmul.f32 %v356, 0.015625
        %v360 = vmul.f32 %v358, 0.015625
        %v361 = vmul.f32 %v351, %v351
        %v362 = vmul.f32 %v352, %v352
        %v363 = vsub.f32 %v359, %v361
        %v364 = vsub.f32 %v360, %v362
        %v365 = vmax.f32 %v363, 0.0
        %v366 = vmax.f32 %v364, 0.0
        %v367 = vadd.f32 %v365, 1e-05
        %v368 = vadd.f32 %v366, 1e-05
        %v369 = vrsqrt.pop %v367
        %v370 = vrsqrt.pop %v368
        %v371 = vsub.f32 %v341, %v351
        %v372 = vsub.f32 %v344, %v352
        %v373 = vmul.f32 %v371, %v369
        %v374 = vmul.f32 %v372, %v370
        %v375 = vld [vmem:[%s2] sm:$0x1]
        %v377 = vlaneseq
        %v378 = vshrl.u32 %v377, 7
        %v379 = vsub.s32 0, %v378
        %v380 = vrot.slane %v375, %v379
        %v382 = vmul.f32 %v373, %v380
        %v383 = vmul.f32 %v374, %v380
        %v384 = vld [vmem:[%s3] sm:$0x1]
        %v386 = vlaneseq
        %v387 = vshrl.u32 %v386, 7
        %v388 = vsub.s32 0, %v387
        %v389 = vrot.slane %v384, %v388
        %v391 = vadd.f32 %v382, %v389
        %v392 = vadd.f32 %v383, %v389
        %v393 = vtanh.pop %v391
        %v394 = vtanh.pop %v392
        %395 = vst [vmem:[%s230] sm:$0xff] %v393
        %396 = vst [vmem:[%s230 + $0x8] sm:$0xff] %v394
        %s397 = sand.u32 %s119, 1
        %s398 = scalar_lea.sflag [#allocation4], %s397
        %s399 = sand.u32 %s119, 1
        %s400 = smul.addr %s399, 16
        %s401 = scalar_lea.vmem [#allocation7], %s400
        // Predicated region
        $region45: #{tpu_custom_call.1} parent=35 // pred_check
          %p402 = pneg %p129
        $region46: #{tpu_custom_call.1} parent=35 // pred_check_branch
          %404 = sbr.rel (%p402) target = $region48
        $region47: #{tpu_custom_call.1} parent=35 // pred_region
          %s405 = smul.u32 2, %s22
          %s407 = ssub.s32 256, 256
          %408 = vsyncadd %s398, %s407
          %s409 = smul.addr %s405, 128
          %s410 = scalar_lea.hbm %s4, %s409
          %s411 = sshll.u32 %s401, 4
          %s412 = int_to_ptr.vmem [resolvable:$true] %s411
          %417 = dma.vmem_to_hbm [thread:$0]  %s412, 256, %s410, %s398, 128, 128, 8
        $region48: #{tpu_custom_call.1} parent=35 // pred_fallthru
          _
      $region36: #{tpu_custom_call.1} parent=5 // pred_fallthru
        _
      %p418 = scmp.le.s32.totalorder 2, %s17
      // Predicated region
      $region49: #{tpu_custom_call.1} parent=5 // pred_check
        %p419 = pneg %p418
      $region50: #{tpu_custom_call.1} parent=5 // pred_check_branch
        %421 = sbr.rel (%p419) target = $region52
      $region51: #{tpu_custom_call.1} parent=5 // pred_region
        %s422 = ssub.s32 %s17, 2
        // Predicated region
        $region53: #{tpu_custom_call.1} parent=51 // pred_check
          %p423 = pneg %p135
        $region54: #{tpu_custom_call.1} parent=51 // pred_check_branch
          %425 = sbr.rel (%p423) target = $region56
        $region55: #{tpu_custom_call.1} parent=51 // pred_region
          %s426 = sand.u32 %s120, 1
          %s427 = scalar_lea.sflag [#allocation4], %s426
          %s428 = sand.u32 %s120, 1
          %s429 = smul.addr %s428, 16
          %s430 = scalar_lea.vmem [#allocation7], %s429
          %431 = dma.done %s427, 256
        $region56: #{tpu_custom_call.1} parent=51 // pred_fallthru
          _
      $region52: #{tpu_custom_call.1} parent=5 // pred_fallthru
        _
    $region6: #{tpu_custom_call.1} parent=1 // loop_footer
      %s21 = sadd.s32 1, %s17
    $region7: #{tpu_custom_call.1} parent=1 // loop_footer_branch
      %16 = sbr.rel target = $region3
    $region8: #{tpu_custom_call.1} parent=1 // loop_exit
      _
    %432 = vsyncpa [#allocation3], 1
    %s433 = scalar_lea.sflag [#allocation3], 1
    %434 = vsyncpa %s433, 1
    %435 = vsyncpa [#allocation6], 1
    %436 = vsyncpa [#allocation4], 1
    %s437 = scalar_lea.sflag [#allocation4], 1
    %438 = vsyncpa %s437, 1

</llo_original>
